<compile_context>
chip_gen: v7x
topology: tpu7x:2x2x1
jax: 0.10.0
libtpu: 0.0.40
codegen_flags: <defaults>
</compile_context>

<pallas_src>
import functools
import math

import jax
import jax.numpy as jnp
from jax.experimental import pallas as pl
from jax.experimental.pallas import tpu as pltpu

VMEM_SPEC = pl.BlockSpec(memory_space=pltpu.MemorySpace.VMEM)


def _vmem_limit_bytes():
    """Generation-aware scoped-VMEM limit (v7x has only 64 MiB per TC)."""
    try:
        phys = pltpu.get_tpu_info().vmem_capacity_bytes
        return int(min(48 * 1024 * 1024, max(phys // 2, 16 * 1024 * 1024)))
    except Exception:  # conservative fallback, safe on v5e/v6e/v7x
        return 32 * 1024 * 1024


VMEM_LIMIT = _vmem_limit_bytes()


def _pick_tile(dim, pref, mult):
    """Largest multiple-of-`mult` tile <= pref dividing dim, else the full dim.

    Returning the full dim is always layout-legal (block == array extent)."""
    if dim <= pref:
        return dim
    t = (pref // mult) * mult
    while t >= mult:
        if dim % t == 0:
            return t
        t -= mult
    return dim


# ---------------------------------------------------------------------------
# Tiled dense: y = act(x @ w + b).  N kept whole (no activation re-stream),
# bf16 MXU operands, f32 accumulation, grid (M/tm, K/tk).
# ---------------------------------------------------------------------------
def _dense_kernel(x_ref, w_ref, b_ref, o_ref, acc_ref, *, activation):
    @pl.when(pl.program_id(1) == 0)
    def _():
        acc_ref[...] = jnp.zeros_like(acc_ref)

    acc_ref[...] += jnp.dot(x_ref[...], w_ref[...],
                            preferred_element_type=jnp.float32)

    @pl.when(pl.program_id(1) == pl.num_programs(1) - 1)
    def _():
        y = acc_ref[...] + b_ref[...]
        if activation == "gelu":  # exact (erf) GELU, matching HF BERT default
            y = 0.5 * y * (1.0 + jax.lax.erf(y * 0.7071067811865476))
        elif activation == "tanh":
            y = jnp.tanh(y)
        o_ref[...] = y.astype(o_ref.dtype)


def _dense_tiles(m, k, tm_pref, tk_pref):
    # keep >= 2 parallel M blocks when M is big enough (v7x 2-TC sharding)
    tm = _pick_tile(m, min(tm_pref, max(m // 2, 256)), 8)
    tk = _pick_tile(k, tk_pref, 256 if k % 256 == 0 else 128)
    return tm, tk


def dense(x, w, b2d, activation="none", out_dtype=jnp.bfloat16,
          tm_pref=512, tk_pref=512):
    m, k = x.shape
    n = w.shape[1]
    tm, tk = _dense_tiles(m, k, tm_pref, tk_pref)
    grid = (m // tm, k // tk)
    kernel = functools.partial(_dense_kernel, activation=activation)
    return pl.pallas_call(
        kernel,
        out_shape=jax.ShapeDtypeStruct((m, n), out_dtype),
        grid_spec=pltpu.PrefetchScalarGridSpec(
            num_scalar_prefetch=0,
            grid=grid,
            in_specs=[
                pl.BlockSpec((tm, tk), lambda i, kk: (i, kk)),
                pl.BlockSpec((tk, n), lambda i, kk: (kk, 0)),
                pl.BlockSpec((1, n), lambda i, kk: (0, 0)),
            ],
            out_specs=pl.BlockSpec((tm, n), lambda i, kk: (i, 0)),
            scratch_shapes=[pltpu.VMEM((tm, n), jnp.float32)],
        ),
        compiler_params=pltpu.CompilerParams(
            dimension_semantics=("parallel", "arbitrary"),
            vmem_limit_bytes=VMEM_LIMIT),
    )(x, w, b2d)


# ---------------------------------------------------------------------------
# Fused: y = LayerNorm(x @ w + b + residual) * gamma + beta   (N kept whole)
# x / residual are bf16; LN math in f32; output bf16.
# ---------------------------------------------------------------------------
def _dense_res_ln_kernel(x_ref, w_ref, b_ref, r_ref, g_ref, be_ref, o_ref, acc_ref):
    @pl.when(pl.program_id(1) == 0)
    def _():
        acc_ref[...] = jnp.zeros_like(acc_ref)

    acc_ref[...] += jnp.dot(x_ref[...], w_ref[...],
                            preferred_element_type=jnp.float32)

    @pl.when(pl.program_id(1) == pl.num_programs(1) - 1)
    def _():
        y = acc_ref[...] + b_ref[...] + r_ref[...].astype(jnp.float32)
        mu = jnp.mean(y, axis=-1, keepdims=True)
        var = jnp.mean(jnp.square(y - mu), axis=-1, keepdims=True)
        o_ref[...] = (((y - mu) * jax.lax.rsqrt(var + 1e-12)) * g_ref[...]
                      + be_ref[...]).astype(o_ref.dtype)


def dense_residual_ln(x, w, b2d, residual, gamma2d, beta2d,
                      tm_pref=512, tk_pref=512):
    m, k = x.shape
    n = w.shape[1]
    tm, tk = _dense_tiles(m, k, tm_pref, tk_pref)
    grid = (m // tm, k // tk)
    return pl.pallas_call(
        _dense_res_ln_kernel,
        out_shape=jax.ShapeDtypeStruct((m, n), jnp.bfloat16),
        grid_spec=pltpu.PrefetchScalarGridSpec(
            num_scalar_prefetch=0,
            grid=grid,
            in_specs=[
                pl.BlockSpec((tm, tk), lambda i, kk: (i, kk)),
                pl.BlockSpec((tk, n), lambda i, kk: (kk, 0)),
                pl.BlockSpec((1, n), lambda i, kk: (0, 0)),
                pl.BlockSpec((tm, n), lambda i, kk: (i, 0)),
                pl.BlockSpec((1, n), lambda i, kk: (0, 0)),
                pl.BlockSpec((1, n), lambda i, kk: (0, 0)),
            ],
            out_specs=pl.BlockSpec((tm, n), lambda i, kk: (i, 0)),
            scratch_shapes=[pltpu.VMEM((tm, n), jnp.float32)],
        ),
        compiler_params=pltpu.CompilerParams(
            dimension_semantics=("parallel", "arbitrary"),
            vmem_limit_bytes=VMEM_LIMIT),
    )(x, w, b2d, residual, gamma2d, beta2d)


# ---------------------------------------------------------------------------
# Fused embedding sum + LayerNorm:  bf16 LN(word + pos + type), gridded over B
# ---------------------------------------------------------------------------
def _emb_ln_kernel(we_ref, pe_ref, te_ref, g_ref, b_ref, o_ref):
    x = we_ref[0] + pe_ref[...] + te_ref[...]          # (S, H) f32
    mu = jnp.mean(x, axis=-1, keepdims=True)
    var = jnp.mean(jnp.square(x - mu), axis=-1, keepdims=True)
    o_ref[0] = (((x - mu) * jax.lax.rsqrt(var + 1e-12)) * g_ref[...]
                + b_ref[...]).astype(o_ref.dtype)


def embed_layernorm(we, pe, te1, gamma2d, beta2d):
    b, s, h = we.shape
    return pl.pallas_call(
        _emb_ln_kernel,
        out_shape=jax.ShapeDtypeStruct((b, s, h), jnp.bfloat16),
        grid_spec=pltpu.PrefetchScalarGridSpec(
            num_scalar_prefetch=0,
            grid=(b,),
            in_specs=[
                pl.BlockSpec((1, s, h), lambda i: (i, 0, 0)),
                pl.BlockSpec((s, h), lambda i: (0, 0)),
                pl.BlockSpec((1, h), lambda i: (0, 0)),
                pl.BlockSpec((1, h), lambda i: (0, 0)),
                pl.BlockSpec((1, h), lambda i: (0, 0)),
            ],
            out_specs=pl.BlockSpec((1, s, h), lambda i: (i, 0, 0)),
        ),
        compiler_params=pltpu.CompilerParams(
            dimension_semantics=("parallel",),
            vmem_limit_bytes=VMEM_LIMIT),
    )(we, pe, te1, gamma2d, beta2d)


# ---------------------------------------------------------------------------
# Attention: gridded over batch, QKV slab (1, S, 3H), all heads processed in
# one grid step (static lane slices), scale folded into q, f32 softmax with
# EUP reciprocal, lane-dense (S, H) bf16 output (no JAX-side head transposes).
# ---------------------------------------------------------------------------
# TODO(synk): for very long sequences (S >> 512) add a KV-block loop with
#             online softmax; full-S tiles are fine at BERT sizes.
def _attn_kernel(qkv_ref, o_ref, *, nh, dh, scale):
    qkv = qkv_ref[0]                                   # (S, 3H) bf16
    h = nh * dh
    outs = []
    for hh in range(nh):                               # unrolled, nh is small
        q = qkv[:, hh * dh:(hh + 1) * dh] * scale      # fold 1/sqrt(dh) into q
        k = qkv[:, h + hh * dh: h + (hh + 1) * dh]
        v = qkv[:, 2 * h + hh * dh: 2 * h + (hh + 1) * dh]
        s = jax.lax.dot_general(q, k, (((1,), (1,)), ((), ())),
                                preferred_element_type=jnp.float32)
        m = jnp.max(s, axis=-1, keepdims=True)
        p = jnp.exp(s - m)
        p = p * pl.reciprocal(jnp.sum(p, axis=-1, keepdims=True), approx=True)
        outs.append(jnp.dot(p.astype(jnp.bfloat16), v,
                            preferred_element_type=jnp.float32))
    o_ref[0] = jnp.concatenate(outs, axis=-1).astype(o_ref.dtype)


def attention(qkv_bsh, nh, dh):
    b, s, h3 = qkv_bsh.shape
    h = h3 // 3
    kernel = functools.partial(_attn_kernel, nh=nh, dh=dh,
                               scale=1.0 / math.sqrt(dh))
    return pl.pallas_call(
        kernel,
        out_shape=jax.ShapeDtypeStruct((b, s, h), jnp.bfloat16),
        grid_spec=pltpu.PrefetchScalarGridSpec(
            num_scalar_prefetch=0,
            grid=(b,),
            in_specs=[pl.BlockSpec((1, s, h3), lambda i: (i, 0, 0))],
            out_specs=pl.BlockSpec((1, s, h), lambda i: (i, 0, 0)),
        ),
        compiler_params=pltpu.CompilerParams(
            dimension_semantics=("parallel",),
            vmem_limit_bytes=VMEM_LIMIT),
    )(qkv_bsh)


# ---------------------------------------------------------------------------
# Fused head: pooler(dense+tanh) -> classifier(dense) -> cross-entropy
# ---------------------------------------------------------------------------
def _head_kernel(x_ref, pw_ref, pb_ref, cw_ref, cb_ref, oh_ref,
                 logits_ref, loss_ref):
    x = x_ref[...]                                               # (B, H) bf16
    pooled = jnp.tanh(
        jnp.dot(x, pw_ref[...], preferred_element_type=jnp.float32) + pb_ref[...])
    logits = jnp.dot(pooled.astype(jnp.bfloat16), cw_ref[...],
                     preferred_element_type=jnp.float32) + cb_ref[...]
    logits_ref[...] = logits
    m = jnp.max(logits, axis=-1, keepdims=True)
    z = logits - m
    lse = jnp.log(jnp.sum(jnp.exp(z), axis=-1, keepdims=True))
    nll = -jnp.sum(oh_ref[...] * (z - lse), axis=-1, keepdims=True)   # (B, 1)
    loss_ref[...] = jnp.mean(nll, axis=0, keepdims=True)              # (1, 1)


def classifier_head(first_tok, pool_w, pool_b2d, cls_w, cls_b2d, onehot):
    b = first_tok.shape[0]
    num_labels = cls_w.shape[1]
    return pl.pallas_call(
        _head_kernel,
        out_shape=(jax.ShapeDtypeStruct((b, num_labels), jnp.float32),
                   jax.ShapeDtypeStruct((1, 1), jnp.float32)),
        in_specs=[VMEM_SPEC] * 6,
        out_specs=(VMEM_SPEC, VMEM_SPEC),
        compiler_params=pltpu.CompilerParams(vmem_limit_bytes=VMEM_LIMIT),
    )(first_tok, pool_w, pool_b2d, cls_w, cls_b2d, onehot)


# ---------------------------------------------------------------------------
# Parameter init (deterministic, synthetic) + one-time preprocessing
# ---------------------------------------------------------------------------
def init_params(key, cfg):
    h, inter = cfg["hidden"], cfg["intermediate"]

    def normal(k, shape):
        return 0.02 * jax.random.normal(k, shape, dtype=jnp.float32)

    keys = iter(jax.random.split(key, 16 + cfg["layers"] * 16))
    p = {
        "word_emb": normal(next(keys), (cfg["vocab"], h)),
        "pos_emb": normal(next(keys), (cfg["max_pos"], h)),
        "type_emb": normal(next(keys), (cfg["type_vocab"], h)),
        "emb_ln_g": jnp.ones((h,), jnp.float32),
        "emb_ln_b": jnp.zeros((h,), jnp.float32),
        "pool_w": normal(next(keys), (h, h)),
        "pool_b": jnp.zeros((h,), jnp.float32),
        "cls_w": normal(next(keys), (h, cfg["num_labels"])),
        "cls_b": jnp.zeros((cfg["num_labels"],), jnp.float32),
        "layers": [],
    }
    for _ in range(cfg["layers"]):
        p["layers"].append({
            "wq": normal(next(keys), (h, h)), "bq": jnp.zeros((h,), jnp.float32),
            "wk": normal(next(keys), (h, h)), "bk": jnp.zeros((h,), jnp.float32),
            "wv": normal(next(keys), (h, h)), "bv": jnp.zeros((h,), jnp.float32),
            "wo": normal(next(keys), (h, h)), "bo": jnp.zeros((h,), jnp.float32),
            "ln1_g": jnp.ones((h,), jnp.float32), "ln1_b": jnp.zeros((h,), jnp.float32),
            "wi": normal(next(keys), (h, inter)), "bi": jnp.zeros((inter,), jnp.float32),
            "wf": normal(next(keys), (inter, h)), "bf": jnp.zeros((h,), jnp.float32),
            "ln2_g": jnp.ones((h,), jnp.float32), "ln2_b": jnp.zeros((h,), jnp.float32),
        })
    return p


def prepare_params(p):
    """Hoisted once outside the layer loop: QKV fusion, bf16 weight cast,
    (1, N) bias/gamma/beta reshapes."""
    bf16 = jnp.bfloat16
    f = {
        "word_emb": p["word_emb"],
        "pos_emb": p["pos_emb"],
        "type_emb": p["type_emb"],
        "emb_ln_g": p["emb_ln_g"].reshape(1, -1),
        "emb_ln_b": p["emb_ln_b"].reshape(1, -1),
        "pool_w": p["pool_w"].astype(bf16),
        "pool_b": p["pool_b"].reshape(1, -1),
        "cls_w": p["cls_w"].astype(bf16),
        "cls_b": p["cls_b"].reshape(1, -1),
        "layers": [],
    }
    for l in p["layers"]:
        f["layers"].append({
            "wqkv": jnp.concatenate([l["wq"], l["wk"], l["wv"]], axis=1).astype(bf16),
            "bqkv": jnp.concatenate([l["bq"], l["bk"], l["bv"]]).reshape(1, -1),
            "wo": l["wo"].astype(bf16), "bo": l["bo"].reshape(1, -1),
            "ln1_g": l["ln1_g"].reshape(1, -1), "ln1_b": l["ln1_b"].reshape(1, -1),
            "wi": l["wi"].astype(bf16), "bi": l["bi"].reshape(1, -1),
            "wf": l["wf"].astype(bf16), "bf": l["bf"].reshape(1, -1),
            "ln2_g": l["ln2_g"].reshape(1, -1), "ln2_b": l["ln2_b"].reshape(1, -1),
        })
    return f


# ---------------------------------------------------------------------------
# Forward pass (glue in JAX, compute in Pallas)
# ---------------------------------------------------------------------------
def bert_forward(params, input_ids, labels, cfg):
    b, s = input_ids.shape
    h = cfg["hidden"]
    nh = cfg["heads"]
    dh = h // nh

    # embeddings: gather is glue; sum + LayerNorm fused in one kernel.
    # token_type 0 == HF default token_type_ids.
    we = params["word_emb"][input_ids]                    # (B, S, H) f32
    x = embed_layernorm(we, params["pos_emb"][:s], params["type_emb"][0:1],
                        params["emb_ln_g"], params["emb_ln_b"])   # (B, S, H) bf16
    x = x.reshape(b * s, h)

    for layer in params["layers"]:
        # fused QKV projection (one launch, one read of x), bf16 out
        qkv = dense(x, layer["wqkv"], layer["bqkv"], out_dtype=jnp.bfloat16)
        # attention over the (B, S, 3H) slab; no head transposes in JAX
        ctx = attention(qkv.reshape(b, s, 3 * h), nh, dh)          # (B, S, H) bf16
        # fused: out-proj + residual + LayerNorm (bf16 out)
        x = dense_residual_ln(ctx.reshape(b * s, h), layer["wo"], layer["bo"], x,
                              layer["ln1_g"], layer["ln1_b"])
        inter = dense(x, layer["wi"], layer["bi"], activation="gelu",
                      out_dtype=jnp.bfloat16)
        # fused: FFN-out + residual + LayerNorm (bf16 out)
        x = dense_residual_ln(inter, layer["wf"], layer["bf"], x,
                              layer["ln2_g"], layer["ln2_b"])

    # fused pooler (dense+tanh) -> classifier -> cross-entropy
    first_tok = x.reshape(b, s, h)[:, 0, :]
    onehot = jax.nn.one_hot(labels, cfg["num_labels"], dtype=jnp.float32)
    logits, loss = classifier_head(first_tok, params["pool_w"], params["pool_b"],
                                   params["cls_w"], params["cls_b"], onehot)
    return loss[0, 0], logits


# ---------------------------------------------------------------------------
if __name__ == "__main__":
    cfg = {
        "vocab": 50,
        "hidden": 32,
        "heads": 4,
        "layers": 2,
        "intermediate": 64,
        "max_pos": 16,
        "type_vocab": 2,
        "num_labels": 2,
    }
    B, S = 2, 8

    root = jax.random.PRNGKey(0)
    k_params, k_ids, k_lbl = jax.random.split(root, 3)
    params = prepare_params(init_params(k_params, cfg))
    input_ids = jax.random.randint(k_ids, (B, S), 0, cfg["vocab"], dtype=jnp.int32)
    labels = jax.random.randint(k_lbl, (B,), 0, cfg["num_labels"], dtype=jnp.int32)

    loss, logits = bert_forward(params, input_ids, labels, cfg)
    jax.block_until_ready((loss, logits))
    assert logits.shape == (B, cfg["num_labels"])
    assert loss.shape == ()
    assert bool(jnp.isfinite(loss)) and bool(jnp.all(jnp.isfinite(logits)))
    print("KERNEL_OK")
</pallas_src>

<mosaic_0001>
module attributes {stable_mosaic.version = 11 : i64} {
  func.func @_emb_ln_kernel(%arg0: i32, %arg1: memref<1x8x32xf32, #tpu.memory_space<vmem>>, %arg2: memref<8x32xf32, #tpu.memory_space<vmem>>, %arg3: memref<1x32xf32, #tpu.memory_space<vmem>>, %arg4: memref<1x32xf32, #tpu.memory_space<vmem>>, %arg5: memref<1x32xf32, #tpu.memory_space<vmem>>, %arg6: memref<1x8x32xbf16, #tpu.memory_space<vmem>>) attributes {dimension_semantics = [#tpu.dimension_semantics<parallel>], iteration_bounds = array<i64: 2>, scalar_prefetch = 0 : i64, scratch_operands = 0 : i64, tpu.core_type = #tpu.core_type<tc>, window_params = [{transform_indices = @transform_0, window_bounds = array<i64: 1, 8, 32>}, {pipeline_mode = #tpu.pipeline_mode<synchronous>, transform_indices = @transform_1, window_bounds = array<i64: 8, 32>}, {pipeline_mode = #tpu.pipeline_mode<synchronous>, transform_indices = @transform_2, window_bounds = array<i64: 1, 32>}, {pipeline_mode = #tpu.pipeline_mode<synchronous>, transform_indices = @transform_3, window_bounds = array<i64: 1, 32>}, {pipeline_mode = #tpu.pipeline_mode<synchronous>, transform_indices = @transform_4, window_bounds = array<i64: 1, 32>}, {transform_indices = @transform_5, window_bounds = array<i64: 1, 8, 32>}]} {
    %c0 = arith.constant 0 : index
    %c0_0 = arith.constant 0 : index
    %c0_1 = arith.constant 0 : index
    %0 = vector.load %arg1[%c0, %c0_0, %c0_1] : memref<1x8x32xf32, #tpu.memory_space<vmem>>, vector<1x8x32xf32>
    %1 = vector.shape_cast %0 : vector<1x8x32xf32> to vector<8x32xf32>
    %c0_2 = arith.constant 0 : index
    %c0_3 = arith.constant 0 : index
    %2 = vector.load %arg2[%c0_2, %c0_3] : memref<8x32xf32, #tpu.memory_space<vmem>>, vector<8x32xf32>
    %3 = arith.addf %1, %2 : vector<8x32xf32>
    %c0_4 = arith.constant 0 : index
    %c0_5 = arith.constant 0 : index
    %4 = vector.load %arg3[%c0_4, %c0_5] : memref<1x32xf32, #tpu.memory_space<vmem>>, vector<1x32xf32>
    %5 = vector.broadcast %4 : vector<1x32xf32> to vector<8x32xf32>
    %6 = arith.addf %3, %5 : vector<8x32xf32>
    %cst = arith.constant dense<0.000000e+00> : vector<8xf32>
    %7 = vector.multi_reduction <add>, %6, %cst [1] : vector<8x32xf32> to vector<8xf32>
    %8 = vector.shape_cast %7 : vector<8xf32> to vector<8x1xf32>
    %cst_6 = arith.constant 3.200000e+01 : f32
    %9 = vector.broadcast %cst_6 : f32 to vector<8x1xf32>
    %10 = arith.divf %8, %9 : vector<8x1xf32>
    %11 = vector.broadcast %10 : vector<8x1xf32> to vector<8x32xf32>
    %12 = arith.subf %6, %11 : vector<8x32xf32>
    %13 = arith.mulf %12, %12 : vector<8x32xf32>
    %cst_7 = arith.constant dense<0.000000e+00> : vector<8xf32>
    %14 = vector.multi_reduction <add>, %13, %cst_7 [1] : vector<8x32xf32> to vector<8xf32>
    %15 = vector.shape_cast %14 : vector<8xf32> to vector<8x1xf32>
    %cst_8 = arith.constant 3.200000e+01 : f32
    %16 = vector.broadcast %cst_8 : f32 to vector<8x1xf32>
    %17 = arith.divf %15, %16 : vector<8x1xf32>
    %18 = vector.broadcast %10 : vector<8x1xf32> to vector<8x32xf32>
    %19 = arith.subf %6, %18 : vector<8x32xf32>
    %cst_9 = arith.constant 9.99999996E-13 : f32
    %20 = vector.broadcast %cst_9 : f32 to vector<8x1xf32>
    %21 = arith.addf %17, %20 : vector<8x1xf32>
    %22 = math.rsqrt %21 : vector<8x1xf32>
    %23 = vector.broadcast %22 : vector<8x1xf32> to vector<8x32xf32>
    %24 = arith.mulf %19, %23 : vector<8x32xf32>
    %c0_10 = arith.constant 0 : index
    %c0_11 = arith.constant 0 : index
    %25 = vector.load %arg4[%c0_10, %c0_11] : memref<1x32xf32, #tpu.memory_space<vmem>>, vector<1x32xf32>
    %26 = vector.broadcast %25 : vector<1x32xf32> to vector<8x32xf32>
    %27 = arith.mulf %24, %26 : vector<8x32xf32>
    %c0_12 = arith.constant 0 : index
    %c0_13 = arith.constant 0 : index
    %28 = vector.load %arg5[%c0_12, %c0_13] : memref<1x32xf32, #tpu.memory_space<vmem>>, vector<1x32xf32>
    %29 = vector.broadcast %28 : vector<1x32xf32> to vector<8x32xf32>
    %30 = arith.addf %27, %29 : vector<8x32xf32>
    %31 = arith.truncf %30 : vector<8x32xf32> to vector<8x32xbf16>
    %c0_14 = arith.constant 0 : index
    %c0_15 = arith.constant 0 : index
    %c0_16 = arith.constant 0 : index
    %32 = vector.load %arg6[%c0_14, %c0_15, %c0_16] : memref<1x8x32xbf16, #tpu.memory_space<vmem>>, vector<1x8x32xbf16>
    %33 = vector.shape_cast %32 : vector<1x8x32xbf16> to vector<8x32xbf16>
    %34 = vector.shape_cast %31 : vector<8x32xbf16> to vector<1x8x32xbf16>
    tpu.vector_store %arg6[%c0_14, %c0_15, %c0_16], %34 {strides = array<i32>} : memref<1x8x32xbf16, #tpu.memory_space<vmem>>, vector<1x8x32xbf16>,
    return
  }
  func.func @transform_0(%arg0: i32) -> (i32, i32, i32) {
    %c0_i32 = arith.constant 0 : i32
    %c0_i32_0 = arith.constant 0 : i32
    %c0_i32_1 = arith.constant 0 : i32
    return %arg0, %c0_i32, %c0_i32_0 : i32, i32, i32
  }
  func.func @transform_1(%arg0: i32) -> (i32, i32) {
    %c0_i32 = arith.constant 0 : i32
    %c0_i32_0 = arith.constant 0 : i32
    %c0_i32_1 = arith.constant 0 : i32
    return %c0_i32, %c0_i32_0 : i32, i32
  }
  func.func @transform_2(%arg0: i32) -> (i32, i32) {
    %c0_i32 = arith.constant 0 : i32
    %c0_i32_0 = arith.constant 0 : i32
    %c0_i32_1 = arith.constant 0 : i32
    return %c0_i32, %c0_i32_0 : i32, i32
  }
  func.func @transform_3(%arg0: i32) -> (i32, i32) {
    %c0_i32 = arith.constant 0 : i32
    %c0_i32_0 = arith.constant 0 : i32
    %c0_i32_1 = arith.constant 0 : i32
    return %c0_i32, %c0_i32_0 : i32, i32
  }
  func.func @transform_4(%arg0: i32) -> (i32, i32) {
    %c0_i32 = arith.constant 0 : i32
    %c0_i32_0 = arith.constant 0 : i32
    %c0_i32_1 = arith.constant 0 : i32
    return %c0_i32, %c0_i32_0 : i32, i32
  }
  func.func @transform_5(%arg0: i32) -> (i32, i32, i32) {
    %c0_i32 = arith.constant 0 : i32
    %c0_i32_0 = arith.constant 0 : i32
    %c0_i32_1 = arith.constant 0 : i32
    return %arg0, %c0_i32, %c0_i32_0 : i32, i32, i32
  }
}

</mosaic_0001>

<llo_original>
// kernel: tpu_custom_call.1
$region0: #{tpu_custom_call.1}
  #allocation0 [shape = 'u32[]', space=smem, size = 0x4, offset = 0x4, fixed_abs, tag = 'smem constant byte address 0x4 - core index']
  #allocation1 [shape = 'u32[144,128]{1,0:T(1,128)}', space=vmem, size = 0x12000, scoped, tag = 'internal scratch']
  %s0 = inlined_call_operand.hbm [shape: f32[2,8,32], index: 0, kind: input, shape index: {}]
  %s1 = inlined_call_operand.hbm [shape: f32[8,32], index: 1, kind: input, shape index: {}]
  %s2 = inlined_call_operand.vmem [shape: f32[1,32], index: 2, kind: input, shape index: {}]
  %s3 = inlined_call_operand.vmem [shape: f32[1,32], index: 3, kind: input, shape index: {}]
  %s4 = inlined_call_operand.vmem [shape: f32[1,32], index: 4, kind: input, shape index: {}]
  %s5 = inlined_call_operand.hbm [shape: bf16[2,8,32], index: 5, kind: output, shape index: {}]
  %s6 = sld [smem:[#allocation0]]
  $region61: #{tpu_custom_call.1} parent=0
    _
  %s8 = ssub.s32 1, %s6
  %s9 = scalar_select 0, %s8, %s6
  $region1: #{tpu_custom_call.1} parent=0
    #allocation2 [shape = 'u8[8192]{0}', space=vmem, size = 0x2000, scoped, tag = 'input window, operand 0']
    #allocation3 [shape = 's32[2]{0}', space=sflag, size = 0x8, scoped, tag = 'scoped memory for tpu_custom_call.1']
    #allocation4 [shape = 's32[2]{0}', space=sflag, size = 0x8, scoped, tag = 'scoped memory for tpu_custom_call.1']
    #allocation5 [shape = 'u8[4096]{0}', space=vmem, size = 0x1000, scoped, tag = 'input window, operand 1, single buffered']
    #allocation6 [shape = 's32[1]{0}', space=sflag, size = 0x4, scoped, tag = 'scoped memory for tpu_custom_call.1']
    #allocation7 [shape = 'u8[4096]{0}', space=vmem, size = 0x1000, scoped, tag = 'output window, operand 0']
    %10 = vsyncpa [#allocation3], 0
    %s11 = scalar_lea.sflag [#allocation3], 1
    %12 = vsyncpa %s11, 0
    %13 = vsyncpa [#allocation6], 0
    %14 = vsyncpa [#allocation4], 0
    %s15 = scalar_lea.sflag [#allocation4], 1
    %16 = vsyncpa %s15, 0
    loop: start=0, step=1, limit=4
    $region2: #{tpu_custom_call.1} parent=1 // loop_pre_header
      _
    $region3: #{tpu_custom_call.1} parent=1 // loop_header
      %s18 = sphi 0, %s22
      %p19 = scmp.ge.s32.totalorder %s18, 4
      %s28 = sphi 0, %s30
      %s31 = sphi 0, %s28
      %s32 = sphi 0, %s31
      %s48 = sphi 0, %s32
      %s52 = sphi 0, %s52
      %s54 = sphi 0, %s52
      %s55 = sphi 0, %s54
      %s69 = sphi 0, %s55
      %s73 = sphi 0, %s73
      %s75 = sphi 0, %s73
      %s76 = sphi 0, %s75
      %s90 = sphi 0, %s76
      %s94 = sphi 0, %s94
      %s96 = sphi 0, %s94
      %s97 = sphi 0, %s96
      %s111 = sphi 0, %s97
      %s115 = sphi 0, %s115
      %s117 = sphi 0, %s115
      %s118 = sphi 0, %s117
      %s132 = sphi 0, %s118
      %s138 = sphi 0, %s140
      %s141 = sphi 0, %s138
      %s142 = sphi 0, %s141
      %s158 = sphi 0, %s142
    $region4: #{tpu_custom_call.1} parent=1 // loop_header_branch
      %21 = sbr.rel (%p19) target = $region8
    $region5: #{tpu_custom_call.1} parent=1 // loop_body
      %s23 = ssub.s32 %s18, 1
      %s24 = ssub.s32 %s18, 2
      %s25 = sadd.s32 %s18, 1
      %s26 = ssub.s32 %s18, %s25
      %p27 = scmp.eq.s32.totalorder %s26, 0
      %s29 = sadd.s32 %s28, 1
      %s30 = scalar_select %p27, %s28, %s29
      %p33 = pneg %p27
      %p34 = scmp.eq.s32.totalorder %s18, 1
      %p35 = por %p33, %p34
      %p36 = scmp.ne.s32.totalorder %s28, %s31
      %p37 = scmp.eq.s32.totalorder %s18, 0
      %p38 = por %p36, %p37
      %p39 = scmp.ne.s32.totalorder %s28, %s31
      %p40 = scmp.eq.s32.totalorder %s23, 1
      %p41 = por %p39, %p40
      %p42 = scmp.ne.s32.totalorder %s31, %s32
      %p43 = scmp.eq.s32.totalorder %s23, 0
      %p44 = por %p42, %p43
      %p45 = scmp.ne.s32.totalorder %s31, %s32
      %p46 = scmp.eq.s32.totalorder %s24, 1
      %p47 = por %p45, %p46
      %p49 = scmp.ne.s32.totalorder %s32, %s48
      %p50 = scmp.eq.s32.totalorder %s24, 0
      %p51 = por %p49, %p50
      %s53 = sadd.s32 %s52, 1
      %p56 = scmp.eq.s32.totalorder %s18, 1
      %p57 = scmp.ne.s32.totalorder %s52, %s54
      %p58 = scmp.eq.s32.totalorder %s18, 0
      %p59 = por %p57, %p58
      %p60 = scmp.ne.s32.totalorder %s52, %s54
      %p61 = scmp.eq.s32.totalorder %s23, 1
      %p62 = por %p60, %p61
      %p63 = scmp.ne.s32.totalorder %s54, %s55
      %p64 = scmp.eq.s32.totalorder %s23, 0
      %p65 = por %p63, %p64
      %p66 = scmp.ne.s32.totalorder %s54, %s55
      %p67 = scmp.eq.s32.totalorder %s24, 1
      %p68 = por %p66, %p67
      %p70 = scmp.ne.s32.totalorder %s55, %s69
      %p71 = scmp.eq.s32.totalorder %s24, 0
      %p72 = por %p70, %p71
      %s74 = sadd.s32 %s73, 1
      %p77 = scmp.eq.s32.totalorder %s18, 1
      %p78 = scmp.ne.s32.totalorder %s73, %s75
      %p79 = scmp.eq.s32.totalorder %s18, 0
      %p80 = por %p78, %p79
      %p81 = scmp.ne.s32.totalorder %s73, %s75
      %p82 = scmp.eq.s32.totalorder %s23, 1
      %p83 = por %p81, %p82
      %p84 = scmp.ne.s32.totalorder %s75, %s76
      %p85 = scmp.eq.s32.totalorder %s23, 0
      %p86 = por %p84, %p85
      %p87 = scmp.ne.s32.totalorder %s75, %s76
      %p88 = scmp.eq.s32.totalorder %s24, 1
      %p89 = por %p87, %p88
      %p91 = scmp.ne.s32.totalorder %s76, %s90
      %p92 = scmp.eq.s32.totalorder %s24, 0
      %p93 = por %p91, %p92
      %s95 = sadd.s32 %s94, 1
      %p98 = scmp.eq.s32.totalorder %s18, 1
      %p99 = scmp.ne.s32.totalorder %s94, %s96
      %p100 = scmp.eq.s32.totalorder %s18, 0
      %p101 = por %p99, %p100
      %p102 = scmp.ne.s32.totalorder %s94, %s96
      %p103 = scmp.eq.s32.totalorder %s23, 1
      %p104 = por %p102, %p103
      %p105 = scmp.ne.s32.totalorder %s96, %s97
      %p106 = scmp.eq.s32.totalorder %s23, 0
      %p107 = por %p105, %p106
      %p108 = scmp.ne.s32.totalorder %s96, %s97
      %p109 = scmp.eq.s32.totalorder %s24, 1
      %p110 = por %p108, %p109
      %p112 = scmp.ne.s32.totalorder %s97, %s111
      %p113 = scmp.eq.s32.totalorder %s24, 0
      %p114 = por %p112, %p113
      %s116 = sadd.s32 %s115, 1
      %p119 = scmp.eq.s32.totalorder %s18, 1
      %p120 = scmp.ne.s32.totalorder %s115, %s117
      %p121 = scmp.eq.s32.totalorder %s18, 0
      %p122 = por %p120, %p121
      %p123 = scmp.ne.s32.totalorder %s115, %s117
      %p124 = scmp.eq.s32.totalorder %s23, 1
      %p125 = por %p123, %p124
      %p126 = scmp.ne.s32.totalorder %s117, %s118
      %p127 = scmp.eq.s32.totalorder %s23, 0
      %p128 = por %p126, %p127
      %p129 = scmp.ne.s32.totalorder %s117, %s118
      %p130 = scmp.eq.s32.totalorder %s24, 1
      %p131 = por %p129, %p130
      %p133 = scmp.ne.s32.totalorder %s118, %s132
      %p134 = scmp.eq.s32.totalorder %s24, 0
      %p135 = por %p133, %p134
      %s136 = ssub.s32 %s18, %s25
      %p137 = scmp.eq.s32.totalorder %s136, 0
      %s139 = sadd.s32 %s138, 1
      %s140 = scalar_select %p137, %s138, %s139
      %p143 = pneg %p137
      %p144 = scmp.eq.s32.totalorder %s18, 1
      %p145 = por %p143, %p144
      %p146 = scmp.ne.s32.totalorder %s138, %s141
      %p147 = scmp.eq.s32.totalorder %s18, 0
      %p148 = por %p146, %p147
      %p149 = scmp.ne.s32.totalorder %s138, %s141
      %p150 = scmp.eq.s32.totalorder %s23, 1
      %p151 = por %p149, %p150
      %p152 = scmp.ne.s32.totalorder %s141, %s142
      %p153 = scmp.eq.s32.totalorder %s23, 0
      %p154 = por %p152, %p153
      %p155 = scmp.ne.s32.totalorder %s141, %s142
      %p156 = scmp.eq.s32.totalorder %s24, 1
      %p157 = por %p155, %p156
      %p159 = scmp.ne.s32.totalorder %s142, %s158
      %p160 = scmp.eq.s32.totalorder %s24, 0
      %p161 = por %p159, %p160
      %p162 = scmp.le.s32.totalorder 1, %s18
      %p163 = scmp.lt.s32.totalorder %s18, 3
      %p164 = pnand %p162, %p163
      %p165 = pneg %p164
      // Predicated region
      $region9: #{tpu_custom_call.1} parent=5 // pred_check
        _
      $region10: #{tpu_custom_call.1} parent=5 // pred_check_branch
        %167 = sbr.rel (%p164) target = $region12
      $region11: #{tpu_custom_call.1} parent=5 // pred_region
        %s168 = ssub.s32 %s18, 1
        // Predicated region
        $region13: #{tpu_custom_call.1} parent=11 // pred_check
          %p169 = pneg %p65
        $region14: #{tpu_custom_call.1} parent=11 // pred_check_branch
          %171 = sbr.rel (%p169) target = $region16
        $region15: #{tpu_custom_call.1} parent=11 // pred_region
          %s173 = ssub.s32 128, 128
          %174 = vsyncadd [#allocation6], %s173
          %s176 = sshll.u32 [#allocation5], 4
          %s177 = int_to_ptr.vmem [resolvable:$true] %s176
          %179 = dma.hbm_to_vmem [thread:$0]  %s1, 128, %s177, [#allocation6]
        $region16: #{tpu_custom_call.1} parent=11 // pred_fallthru
          _
        // Predicated region
        $region17: #{tpu_custom_call.1} parent=11 // pred_check
          %p180 = pneg %p86
        $region18: #{tpu_custom_call.1} parent=11 // pred_check_branch
          %182 = sbr.rel (%p180) target = $region20
        $region19: #{tpu_custom_call.1} parent=11 // pred_region
          _
        $region20: #{tpu_custom_call.1} parent=11 // pred_fallthru
          _
        // Predicated region
        $region21: #{tpu_custom_call.1} parent=11 // pred_check
          %p183 = pneg %p107
        $region22: #{tpu_custom_call.1} parent=11 // pred_check_branch
          %185 = sbr.rel (%p183) target = $region24
        $region23: #{tpu_custom_call.1} parent=11 // pred_region
          _
        $region24: #{tpu_custom_call.1} parent=11 // pred_fallthru
          _
        // Predicated region
        $region25: #{tpu_custom_call.1} parent=11 // pred_check
          %p186 = pneg %p128
        $region26: #{tpu_custom_call.1} parent=11 // pred_check_branch
          %188 = sbr.rel (%p186) target = $region28
        $region27: #{tpu_custom_call.1} parent=11 // pred_region
          _
        $region28: #{tpu_custom_call.1} parent=11 // pred_fallthru
          _
      $region12: #{tpu_custom_call.1} parent=5 // pred_fallthru
        _
      %p189 = scmp.lt.s32.totalorder %s18, 2
      // Predicated region
      $region29: #{tpu_custom_call.1} parent=5 // pred_check
        %p190 = pneg %p189
      $region30: #{tpu_custom_call.1} parent=5 // pred_check_branch
        %192 = sbr.rel (%p190) target = $region32
      $region31: #{tpu_custom_call.1} parent=5 // pred_region
        // Predicated region
        $region33: #{tpu_custom_call.1} parent=31 // pred_check
          %p193 = pneg %p38
        $region34: #{tpu_custom_call.1} parent=31 // pred_check_branch
          %195 = sbr.rel (%p193) target = $region36
        $region35: #{tpu_custom_call.1} parent=31 // pred_region
          %s196 = sand.u32 %s28, 1
          %s197 = scalar_lea.sflag [#allocation3], %s196
          %s198 = sand.u32 %s28, 1
          %s199 = smul.addr %s198, 8
          %s200 = scalar_lea.vmem [#allocation2], %s199
          %s202 = ssub.s32 128, 128
          %203 = vsyncadd %s197, %s202
          %s204 = smul.addr %s18, 128
          %s205 = scalar_lea.hbm %s0, %s204
          %s207 = sshll.u32 %s200, 4
          %s208 = int_to_ptr.vmem [resolvable:$true] %s207
          %210 = dma.hbm_to_vmem [thread:$0]  %s205, 128, %s208, %s197
        $region36: #{tpu_custom_call.1} parent=31 // pred_fallthru
          _
      $region32: #{tpu_custom_call.1} parent=5 // pred_fallthru
        _
      %p211 = scmp.le.s32.totalorder 1, %s18
      %p212 = scmp.lt.s32.totalorder %s18, 3
      %p213 = pnand %p211, %p212
      %p214 = pneg %p213
      // Predicated region
      $region37: #{tpu_custom_call.1} parent=5 // pred_check
        _
      $region38: #{tpu_custom_call.1} parent=5 // pred_check_branch
        %216 = sbr.rel (%p213) target = $region40
      $region39: #{tpu_custom_call.1} parent=5 // pred_region
        %s217 = ssub.s32 %s18, 1
        %s218 = sand.u32 %s31, 1
        %s219 = scalar_lea.sflag [#allocation3], %s218
        %s220 = sand.u32 %s31, 1
        %s221 = smul.addr %s220, 8
        %s222 = scalar_lea.vmem [#allocation2], %s221
        // Predicated region
        $region41: #{tpu_custom_call.1} parent=39 // pred_check
          %p223 = pneg %p44
        $region42: #{tpu_custom_call.1} parent=39 // pred_check_branch
          %225 = sbr.rel (%p223) target = $region44
        $region43: #{tpu_custom_call.1} parent=39 // pred_region
          %226 = dma.done %s219, 128
        $region44: #{tpu_custom_call.1} parent=39 // pred_fallthru
          _
        // Predicated region
        $region45: #{tpu_custom_call.1} parent=39 // pred_check
          %p227 = pneg %p65
        $region46: #{tpu_custom_call.1} parent=39 // pred_check_branch
          %229 = sbr.rel (%p227) target = $region48
        $region47: #{tpu_custom_call.1} parent=39 // pred_region
          %230 = dma.done [#allocation6], 128
        $region48: #{tpu_custom_call.1} parent=39 // pred_fallthru
          _
        %s231 = sand.u32 %s31, 1
        %s232 = scalar_lea.sflag [#allocation3], %s231
        %s233 = sand.u32 %s31, 1
        %s234 = smul.addr %s233, 8
        %s235 = scalar_lea.vmem [#allocation2], %s234
        %p236 = pneg %p44
        %p237 = pneg %p41
        %p238 = pneg %p65
        %p239 = pneg %p62
        %p240 = pneg %p86
        %p241 = pneg %p83
        %p242 = pneg %p107
        %p243 = pneg %p104
        %p244 = pneg %p128
        %p245 = pneg %p125
        %p246 = pneg %p154
        %p247 = pneg %p151
        %s248 = sand.u32 %s141, 1
        %s249 = scalar_lea.sflag [#allocation4], %s248
        %s250 = sand.u32 %s141, 1
        %s251 = smul.addr %s250, 4
        %s252 = scalar_lea.vmem [#allocation7], %s251
        %v253 = vld [vmem:[%s222] sm:$0xff]
        %v254 = vld [vmem:[#allocation5] sm:$0xff]
        %v255 = vadd.f32 %v253, %v254
        %v256 = vld [vmem:[%s2] sm:$0x1]
        %v258 = vlaneseq
        %v259 = vshrl.u32 %v258, 7
        %v260 = vsub.s32 0, %v259
        %v261 = vrot.slane %v256, %v260
        %v263 = vadd.f32 %v255, %v261
        %vm264 = vcmask 261120
        %v265 = vsel %vm264, %v263, 0.0
        %266 = vadd.xlane.f32.xlu0 %v265
        %v267 = vpop.xlane.xlu0 %266
        %v268 = vrcp.pop 32.0
        %v269 = vmul.f32 %v267, %v268
        %v270 = vsub.f32 %v263, %v269
        %v271 = vmul.f32 %v270, %v270
        %v272 = vsel %vm264, %v271, 0.0
        %273 = vadd.xlane.f32.xlu0 %v272
        %v274 = vpop.xlane.xlu0 %273
        %v275 = vmul.f32 %v274, %v268
        %v276 = vadd.f32 %v275, 1e-12
        %v277 = vrsqrt.pop %v276
        %v278 = vmul.f32 %v270, %v277
        %v279 = vld [vmem:[%s3] sm:$0x1]
        %v281 = vlaneseq
        %v282 = vshrl.u32 %v281, 7
        %v283 = vsub.s32 0, %v282
        %v284 = vrot.slane %v279, %v283
        %v286 = vmul.f32 %v278, %v284
        %v287 = vld [vmem:[%s4] sm:$0x1]
        %v289 = vlaneseq
        %v290 = vshrl.u32 %v289, 7
        %v291 = vsub.s32 0, %v290
        %v292 = vrot.slane %v287, %v291
        %v294 = vadd.f32 %v286, %v292
        %v295 = vpack.c.bf16 %v294, %v294
        %vm296 = vcmask 257024
        %297 = vst.msk [vmem:[%s252] sm:$0xf] %vm296, %v295
        %s298 = sand.u32 %s141, 1
        %s299 = scalar_lea.sflag [#allocation4], %s298
        %s300 = sand.u32 %s141, 1
        %s301 = smul.addr %s300, 4
        %s302 = scalar_lea.vmem [#allocation7], %s301
        // Predicated region
        $region49: #{tpu_custom_call.1} parent=39 // pred_check
          %p303 = pneg %p151
        $region50: #{tpu_custom_call.1} parent=39 // pred_check_branch
          %305 = sbr.rel (%p303) target = $region52
        $region51: #{tpu_custom_call.1} parent=39 // pred_region
          %s307 = ssub.s32 64, 64
          %308 = vsyncadd %s299, %s307
          %s309 = smul.addr %s23, 64
          %s310 = scalar_lea.hbm %s5, %s309
          %s312 = sshll.u32 %s302, 4
          %s313 = int_to_ptr.vmem [resolvable:$true] %s312
          %315 = dma.vmem_to_hbm [thread:$0]  %s313, 64, %s310, %s299
        $region52: #{tpu_custom_call.1} parent=39 // pred_fallthru
          _
      $region40: #{tpu_custom_call.1} parent=5 // pred_fallthru
        _
      %p316 = scmp.le.s32.totalorder 2, %s18
      // Predicated region
      $region53: #{tpu_custom_call.1} parent=5 // pred_check
        %p317 = pneg %p316
      $region54: #{tpu_custom_call.1} parent=5 // pred_check_branch
        %319 = sbr.rel (%p317) target = $region56
      $region55: #{tpu_custom_call.1} parent=5 // pred_region
        %s320 = ssub.s32 %s18, 2
        // Predicated region
        $region57: #{tpu_custom_call.1} parent=55 // pred_check
          %p321 = pneg %p157
        $region58: #{tpu_custom_call.1} parent=55 // pred_check_branch
          %323 = sbr.rel (%p321) target = $region60
        $region59: #{tpu_custom_call.1} parent=55 // pred_region
          %s324 = sand.u32 %s142, 1
          %s325 = scalar_lea.sflag [#allocation4], %s324
          %s326 = sand.u32 %s142, 1
          %s327 = smul.addr %s326, 4
          %s328 = scalar_lea.vmem [#allocation7], %s327
          %329 = dma.done %s325, 64
        $region60: #{tpu_custom_call.1} parent=55 // pred_fallthru
          _
      $region56: #{tpu_custom_call.1} parent=5 // pred_fallthru
        _
    $region6: #{tpu_custom_call.1} parent=1 // loop_footer
      %s22 = sadd.s32 1, %s18
    $region7: #{tpu_custom_call.1} parent=1 // loop_footer_branch
      %17 = sbr.rel target = $region3
    $region8: #{tpu_custom_call.1} parent=1 // loop_exit
      _
    %330 = vsyncpa [#allocation3], 1
    %s331 = scalar_lea.sflag [#allocation3], 1
    %332 = vsyncpa %s331, 1
    %333 = vsyncpa [#allocation6], 1
    %334 = vsyncpa [#allocation4], 1
    %s335 = scalar_lea.sflag [#allocation4], 1
    %336 = vsyncpa %s335, 1

</llo_original>
